<compile_context>
chip_gen: v5e
topology: v5e:2x2
jax: 0.10.0
libtpu: 0.0.40
codegen_flags: <defaults>
</compile_context>

<pallas_src>
import functools

import jax
import jax.numpy as jnp
import numpy as np
from jax.experimental import pallas as pl
from jax.experimental.pallas import tpu as pltpu

VAR_EPS = 1e-4
LEAKY_SLOPE = 0.01


def _leaky_relu(x):
    return jnp.where(x > 0, x, LEAKY_SLOPE * x)


def _round_up(x, m):
    return ((x + m - 1) // m) * m


def guide_kernel(
    x_ref, d_ref,
    w0x_ref, w0d_ref, b0_ref,
    w1_ref, b1_ref,
    wh_ref, bh_ref,
    eps_ref,
    ls_ref, z_ref,
    *, n_latent,
):
    cdt = w0x_ref.dtype  # matmul operand dtype (bf16 on v6e/v7x; f32 allowed)

    # ---- layer 0: concat([standardize(x), d]) @ W0 as split matmul --------------
    # ('standardize' already folded into w0x / b0 by the wrapper)
    h = (
        jnp.dot(x_ref[...].astype(cdt), w0x_ref[...], preferred_element_type=jnp.float32)
        + jnp.dot(d_ref[...].astype(cdt), w0d_ref[...], preferred_element_type=jnp.float32)
        + b0_ref[...]
    )
    h = _leaky_relu(h)

    # ---- layer 1 (encoder_n_layers = 2) ------------------------------------------
    h = jnp.dot(h.astype(cdt), w1_ref[...], preferred_element_type=jnp.float32) + b1_ref[...]
    h = _leaky_relu(h)

    # ---- fused normal-likelihood heads: one matmul producing [loc | logvar] ------
    head = jnp.dot(h.astype(cdt), wh_ref[...], preferred_element_type=jnp.float32) + bh_ref[...]
    loc = head[:, :n_latent]
    logvar = head[:, n_latent:]
    scale = jnp.sqrt(jnp.exp(logvar) + VAR_EPS)

    # lane-denser single output slab [loc | scale]
    ls_ref[...] = jnp.concatenate([loc, scale], axis=-1)

    # ---- rsample((n_particles,)): z = loc + scale * eps --------------------------
    z_ref[...] = loc[None, :, :] + scale[None, :, :] * eps_ref[...]


def conditional_vae_guide_forward(X, D, params, eps, *, b_tile_max=512, use_bf16=True):
    """Returns ({'q_z': (loc, scale)}, {'z': z}) exactly like the torch guide."""
    B, n_phenos = X.shape
    n_treatments = D.shape[1]
    n_hidden = params["w1"].shape[0]
    n_latent = params["w_loc"].shape[1]
    n_particles = eps.shape[0]

    # ---- fold 'standardize' into first-layer parameters (outside the kernel) ----
    inv_std = 1.0 / params["x_std"]                                    # (1, n_phenos)
    w0x = params["w0_x"] * inv_std.T                                   # (n_phenos, H)
    b0 = params["b0"] - (params["x_mean"] * inv_std) @ params["w0_x"]  # (1, H)
    w0d = params["w0_d"]
    w1, b1 = params["w1"], params["b1"]

    # ---- fuse loc / logvar heads --------------------------------------------------
    wh = jnp.concatenate([params["w_loc"], params["w_var"]], axis=1)   # (H, 2L)
    bh = jnp.concatenate([params["b_loc"], params["b_var"]], axis=1)   # (1, 2L)

    cdt = jnp.bfloat16 if use_bf16 else jnp.float32
    w0x, w0d, w1, wh = (w.astype(cdt) for w in (w0x, w0d, w1, wh))

    # ---- batch tiling (pad to a multiple of the tile; tile rows multiple of 8) ----
    b_tile = min(b_tile_max, _round_up(B, 8))
    B_pad = _round_up(B, b_tile)
    if B_pad != B:
        pad = B_pad - B
        X = jnp.pad(X, ((0, pad), (0, 0)))
        D = jnp.pad(D, ((0, pad), (0, 0)))
        eps = jnp.pad(eps, ((0, 0), (0, pad), (0, 0)))

    grid = (B_pad // b_tile,)
    const = lambda i: (0, 0)
    in_specs = [
        pl.BlockSpec((b_tile, n_phenos), lambda i: (i, 0)),            # X
        pl.BlockSpec((b_tile, n_treatments), lambda i: (i, 0)),        # D
        pl.BlockSpec((n_phenos, n_hidden), const),                     # w0x (resident)
        pl.BlockSpec((n_treatments, n_hidden), const),                 # w0d
        pl.BlockSpec((1, n_hidden), const),                            # b0
        pl.BlockSpec((n_hidden, n_hidden), const),                     # w1
        pl.BlockSpec((1, n_hidden), const),                            # b1
        pl.BlockSpec((n_hidden, 2 * n_latent), const),                 # w_heads
        pl.BlockSpec((1, 2 * n_latent), const),                        # b_heads
        pl.BlockSpec((n_particles, b_tile, n_latent), lambda i: (0, i, 0)),  # eps
    ]
    out_specs = (
        pl.BlockSpec((b_tile, 2 * n_latent), lambda i: (i, 0)),              # [loc|scale]
        pl.BlockSpec((n_particles, b_tile, n_latent), lambda i: (0, i, 0)),  # z
    )

    flops = 2 * B_pad * ((n_phenos + n_treatments) * n_hidden
                         + n_hidden * n_hidden
                         + n_hidden * 2 * n_latent)
    bytes_accessed = (
        4 * (X.size + D.size + 2 * eps.size + B_pad * 2 * n_latent)
        + w0x.dtype.itemsize * (w0x.size + w0d.size + w1.size + wh.size)
        + 4 * (b0.size + b1.size + bh.size)
    )
    cost = pl.CostEstimate(flops=int(flops),
                           transcendentals=int(B_pad * n_latent),
                           bytes_accessed=int(bytes_accessed))

    ls, z = pl.pallas_call(
        functools.partial(guide_kernel, n_latent=n_latent),
        grid=grid,
        in_specs=in_specs,
        out_specs=out_specs,
        out_shape=(
            jax.ShapeDtypeStruct((B_pad, 2 * n_latent), jnp.float32),
            jax.ShapeDtypeStruct((n_particles, B_pad, n_latent), jnp.float32),
        ),
        compiler_params=pltpu.CompilerParams(dimension_semantics=("parallel",)),
        cost_estimate=cost,
    )(X, D, w0x, w0d, b0, w1, b1, wh, bh, eps)

    loc = ls[:B, :n_latent]
    scale = ls[:B, n_latent:]
    z = z[:, :B, :]

    guide_distributions = {"q_z": (loc, scale)}
    guide_samples = {"z": z}
    return guide_distributions, guide_samples


def _linear_init(key, fan_in, fan_out):
    """PyTorch nn.Linear default init: U(-1/sqrt(fan_in), 1/sqrt(fan_in))."""
    kw, kb = jax.random.split(key)
    bound = 1.0 / np.sqrt(fan_in)
    w = jax.random.uniform(kw, (fan_in, fan_out), jnp.float32, -bound, bound)
    b = jax.random.uniform(kb, (1, fan_out), jnp.float32, -bound, bound)
    return w, b


def make_params(key, n_phenos, n_treatments, n_hidden, n_latent):
    keys = jax.random.split(key, 6)
    # normalization statistics ('standardize')
    x_mean = 0.1 * jax.random.normal(keys[0], (1, n_phenos), jnp.float32)
    x_std = jnp.abs(jax.random.normal(keys[1], (1, n_phenos), jnp.float32)) + 0.5

    n_in = n_phenos + n_treatments
    w0, b0 = _linear_init(keys[2], n_in, n_hidden)
    w1, b1 = _linear_init(keys[3], n_hidden, n_hidden)
    w_loc, b_loc = _linear_init(keys[4], n_hidden, n_latent)
    w_var, b_var = _linear_init(keys[5], n_hidden, n_latent)

    return {
        "x_mean": x_mean, "x_std": x_std,
        "w0_x": w0[:n_phenos], "w0_d": w0[n_phenos:], "b0": b0,
        "w1": w1, "b1": b1,
        "w_loc": w_loc, "b_loc": b_loc,
        "w_var": w_var, "b_var": b_var,
    }


def reference_forward(X, D, p, eps):
    x = (X - p["x_mean"]) / p["x_std"]
    h = jnp.concatenate([x, D], axis=-1) @ jnp.concatenate([p["w0_x"], p["w0_d"]], axis=0) + p["b0"]
    h = jnp.where(h > 0, h, LEAKY_SLOPE * h)
    h = h @ p["w1"] + p["b1"]
    h = jnp.where(h > 0, h, LEAKY_SLOPE * h)
    loc = h @ p["w_loc"] + p["b_loc"]
    scale = jnp.sqrt(jnp.exp(h @ p["w_var"] + p["b_var"]) + VAR_EPS)
    z = loc[None] + scale[None] * eps
    return loc, scale, z


if __name__ == "__main__":
    # config: n_latent=16, n_treatments=8, n_phenos=32, encoder_n_layers=2,
    #         encoder_n_hidden=64, encoder_input_normalization='standardize'
    B, n_phenos, n_treatments, n_latent, n_hidden, n_particles = 8, 32, 8, 16, 64, 2

    key = jax.random.PRNGKey(0)
    k_x, k_d, k_eps, k_p = jax.random.split(key, 4)

    X = jax.random.normal(k_x, (B, n_phenos), jnp.float32)
    D = (jax.random.uniform(k_d, (B, n_treatments)) > 0.5).astype(jnp.float32)
    eps = jax.random.normal(k_eps, (n_particles, B, n_latent), jnp.float32)
    params = make_params(k_p, n_phenos, n_treatments, n_hidden, n_latent)

    dists, samples = conditional_vae_guide_forward(X, D, params, eps, use_bf16=True)
    loc, scale = dists["q_z"]
    z = samples["z"]
    jax.block_until_ready((loc, scale, z))

    ref_loc, ref_scale, ref_z = reference_forward(X, D, params, eps)
    # bf16 MXU operands + standardize folding => slightly looser tolerance than f32
    np.testing.assert_allclose(np.asarray(loc), np.asarray(ref_loc), rtol=2e-2, atol=2e-2)
    np.testing.assert_allclose(np.asarray(scale), np.asarray(ref_scale), rtol=2e-2, atol=2e-2)
    np.testing.assert_allclose(np.asarray(z), np.asarray(ref_z), rtol=2e-2, atol=2e-2)

    # TODO(synk): torch.distributions.Normal object itself has no JAX equivalent;
    # q_z is returned as its (loc, scale) parameter pair instead.
    print("KERNEL_OK")
</pallas_src>

<mosaic_0001>
module attributes {stable_mosaic.version = 11 : i64} {
  func.func @guide_kernel(%arg0: i32, %arg1: memref<8x32xf32, #tpu.memory_space<vmem>>, %arg2: memref<8x8xf32, #tpu.memory_space<vmem>>, %arg3: memref<32x64xbf16, #tpu.memory_space<vmem>>, %arg4: memref<8x64xbf16, #tpu.memory_space<vmem>>, %arg5: memref<1x64xf32, #tpu.memory_space<vmem>>, %arg6: memref<64x64xbf16, #tpu.memory_space<vmem>>, %arg7: memref<1x64xf32, #tpu.memory_space<vmem>>, %arg8: memref<64x32xbf16, #tpu.memory_space<vmem>>, %arg9: memref<1x32xf32, #tpu.memory_space<vmem>>, %arg10: memref<2x8x16xf32, #tpu.memory_space<vmem>>, %arg11: memref<8x32xf32, #tpu.memory_space<vmem>>, %arg12: memref<2x8x16xf32, #tpu.memory_space<vmem>>) attributes {dimension_semantics = [#tpu.dimension_semantics<parallel>], iteration_bounds = array<i64: 1>, scalar_prefetch = 0 : i64, scratch_operands = 0 : i64, tpu.core_type = #tpu.core_type<tc>, window_params = [{transform_indices = @transform_0, window_bounds = array<i64: 8, 32>}, {transform_indices = @transform_1, window_bounds = array<i64: 8, 8>}, {pipeline_mode = #tpu.pipeline_mode<synchronous>, transform_indices = @transform_2, window_bounds = array<i64: 32, 64>}, {pipeline_mode = #tpu.pipeline_mode<synchronous>, transform_indices = @transform_3, window_bounds = array<i64: 8, 64>}, {pipeline_mode = #tpu.pipeline_mode<synchronous>, transform_indices = @transform_4, window_bounds = array<i64: 1, 64>}, {pipeline_mode = #tpu.pipeline_mode<synchronous>, transform_indices = @transform_5, window_bounds = array<i64: 64, 64>}, {pipeline_mode = #tpu.pipeline_mode<synchronous>, transform_indices = @transform_6, window_bounds = array<i64: 1, 64>}, {pipeline_mode = #tpu.pipeline_mode<synchronous>, transform_indices = @transform_7, window_bounds = array<i64: 64, 32>}, {pipeline_mode = #tpu.pipeline_mode<synchronous>, transform_indices = @transform_8, window_bounds = array<i64: 1, 32>}, {transform_indices = @transform_9, window_bounds = array<i64: 2, 8, 16>}, {transform_indices = @transform_10, window_bounds = array<i64: 8, 32>}, {transform_indices = @transform_11, window_bounds = array<i64: 2, 8, 16>}]} {
    %c0 = arith.constant 0 : index
    %c0_0 = arith.constant 0 : index
    %0 = vector.load %arg1[%c0, %c0_0] : memref<8x32xf32, #tpu.memory_space<vmem>>, vector<8x32xf32>
    %1 = arith.truncf %0 : vector<8x32xf32> to vector<8x32xbf16>
    %c0_1 = arith.constant 0 : index
    %c0_2 = arith.constant 0 : index
    %2 = vector.load %arg3[%c0_1, %c0_2] : memref<32x64xbf16, #tpu.memory_space<vmem>>, vector<32x64xbf16>
    %cst = arith.constant dense<0.000000e+00> : vector<8x64xf32>
    %3 = tpu.matmul %1, %2, %cst {dimension_numbers = #tpu.dot_dimension_numbers<[1], [0], [0], [1], [0, 0, 1, 1], [], []>} : vector<8x32xbf16>, vector<32x64xbf16>, vector<8x64xf32> -> vector<8x64xf32>
    %c0_3 = arith.constant 0 : index
    %c0_4 = arith.constant 0 : index
    %4 = vector.load %arg2[%c0_3, %c0_4] : memref<8x8xf32, #tpu.memory_space<vmem>>, vector<8x8xf32>
    %5 = arith.truncf %4 : vector<8x8xf32> to vector<8x8xbf16>
    %c0_5 = arith.constant 0 : index
    %c0_6 = arith.constant 0 : index
    %6 = vector.load %arg4[%c0_5, %c0_6] : memref<8x64xbf16, #tpu.memory_space<vmem>>, vector<8x64xbf16>
    %cst_7 = arith.constant dense<0.000000e+00> : vector<8x64xf32>
    %7 = tpu.matmul %5, %6, %cst_7 {dimension_numbers = #tpu.dot_dimension_numbers<[1], [0], [0], [1], [0, 0, 1, 1], [], []>} : vector<8x8xbf16>, vector<8x64xbf16>, vector<8x64xf32> -> vector<8x64xf32>
    %8 = arith.addf %3, %7 : vector<8x64xf32>
    %c0_8 = arith.constant 0 : index
    %c0_9 = arith.constant 0 : index
    %9 = vector.load %arg5[%c0_8, %c0_9] : memref<1x64xf32, #tpu.memory_space<vmem>>, vector<1x64xf32>
    %10 = vector.broadcast %9 : vector<1x64xf32> to vector<8x64xf32>
    %11 = arith.addf %8, %10 : vector<8x64xf32>
    %cst_10 = arith.constant 0.000000e+00 : f32
    %12 = vector.broadcast %cst_10 : f32 to vector<8x64xf32>
    %13 = arith.cmpf ogt, %11, %12 : vector<8x64xf32>
    %cst_11 = arith.constant 0.00999999977 : f32
    %14 = vector.broadcast %cst_11 : f32 to vector<8x64xf32>
    %15 = arith.mulf %14, %11 : vector<8x64xf32>
    %16 = arith.select %13, %11, %15 : vector<8x64xi1>, vector<8x64xf32>
    %17 = arith.truncf %16 : vector<8x64xf32> to vector<8x64xbf16>
    %c0_12 = arith.constant 0 : index
    %c0_13 = arith.constant 0 : index
    %18 = vector.load %arg6[%c0_12, %c0_13] : memref<64x64xbf16, #tpu.memory_space<vmem>>, vector<64x64xbf16>
    %cst_14 = arith.constant dense<0.000000e+00> : vector<8x64xf32>
    %19 = tpu.matmul %17, %18, %cst_14 {dimension_numbers = #tpu.dot_dimension_numbers<[1], [0], [0], [1], [0, 0, 1, 1], [], []>} : vector<8x64xbf16>, vector<64x64xbf16>, vector<8x64xf32> -> vector<8x64xf32>
    %c0_15 = arith.constant 0 : index
    %c0_16 = arith.constant 0 : index
    %20 = vector.load %arg7[%c0_15, %c0_16] : memref<1x64xf32, #tpu.memory_space<vmem>>, vector<1x64xf32>
    %21 = vector.broadcast %20 : vector<1x64xf32> to vector<8x64xf32>
    %22 = arith.addf %19, %21 : vector<8x64xf32>
    %cst_17 = arith.constant 0.000000e+00 : f32
    %23 = vector.broadcast %cst_17 : f32 to vector<8x64xf32>
    %24 = arith.cmpf ogt, %22, %23 : vector<8x64xf32>
    %cst_18 = arith.constant 0.00999999977 : f32
    %25 = vector.broadcast %cst_18 : f32 to vector<8x64xf32>
    %26 = arith.mulf %25, %22 : vector<8x64xf32>
    %27 = arith.select %24, %22, %26 : vector<8x64xi1>, vector<8x64xf32>
    %28 = arith.truncf %27 : vector<8x64xf32> to vector<8x64xbf16>
    %c0_19 = arith.constant 0 : index
    %c0_20 = arith.constant 0 : index
    %29 = vector.load %arg8[%c0_19, %c0_20] : memref<64x32xbf16, #tpu.memory_space<vmem>>, vector<64x32xbf16>
    %cst_21 = arith.constant dense<0.000000e+00> : vector<8x32xf32>
    %30 = tpu.matmul %28, %29, %cst_21 {dimension_numbers = #tpu.dot_dimension_numbers<[1], [0], [0], [1], [0, 0, 1, 1], [], []>} : vector<8x64xbf16>, vector<64x32xbf16>, vector<8x32xf32> -> vector<8x32xf32>
    %c0_22 = arith.constant 0 : index
    %c0_23 = arith.constant 0 : index
    %31 = vector.load %arg9[%c0_22, %c0_23] : memref<1x32xf32, #tpu.memory_space<vmem>>, vector<1x32xf32>
    %32 = vector.broadcast %31 : vector<1x32xf32> to vector<8x32xf32>
    %33 = arith.addf %30, %32 : vector<8x32xf32>
    %34 = vector.extract_strided_slice %33 {offsets = [0, 0], sizes = [8, 16], strides = [1, 1]} : vector<8x32xf32> to vector<8x16xf32>
    %35 = vector.extract_strided_slice %33 {offsets = [0, 16], sizes = [8, 16], strides = [1, 1]} : vector<8x32xf32> to vector<8x16xf32>
    %36 = math.exp %35 : vector<8x16xf32>
    %cst_24 = arith.constant 9.99999974E-5 : f32
    %37 = vector.broadcast %cst_24 : f32 to vector<8x16xf32>
    %38 = arith.addf %36, %37 : vector<8x16xf32>
    %39 = math.sqrt %38 : vector<8x16xf32>
    %40 = tpu.concatenate %34, %39 in 1 : vector<8x16xf32>, vector<8x16xf32> -> vector<8x32xf32>
    %c0_25 = arith.constant 0 : index
    %c0_26 = arith.constant 0 : index
    %41 = vector.load %arg11[%c0_25, %c0_26] : memref<8x32xf32, #tpu.memory_space<vmem>>, vector<8x32xf32>
    tpu.vector_store %arg11[%c0_25, %c0_26], %40 {strides = array<i32>} : memref<8x32xf32, #tpu.memory_space<vmem>>, vector<8x32xf32>,
    %42 = vector.shape_cast %34 : vector<8x16xf32> to vector<1x8x16xf32>
    %43 = vector.shape_cast %39 : vector<8x16xf32> to vector<1x8x16xf32>
    %c0_27 = arith.constant 0 : index
    %c0_28 = arith.constant 0 : index
    %c0_29 = arith.constant 0 : index
    %44 = vector.load %arg10[%c0_27, %c0_28, %c0_29] : memref<2x8x16xf32, #tpu.memory_space<vmem>>, vector<2x8x16xf32>
    %45 = vector.broadcast %43 : vector<1x8x16xf32> to vector<2x8x16xf32>
    %46 = arith.mulf %45, %44 : vector<2x8x16xf32>
    %47 = vector.broadcast %42 : vector<1x8x16xf32> to vector<2x8x16xf32>
    %48 = arith.addf %47, %46 : vector<2x8x16xf32>
    %c0_30 = arith.constant 0 : index
    %c0_31 = arith.constant 0 : index
    %c0_32 = arith.constant 0 : index
    %49 = vector.load %arg12[%c0_30, %c0_31, %c0_32] : memref<2x8x16xf32, #tpu.memory_space<vmem>>, vector<2x8x16xf32>
    tpu.vector_store %arg12[%c0_30, %c0_31, %c0_32], %48 {strides = array<i32>} : memref<2x8x16xf32, #tpu.memory_space<vmem>>, vector<2x8x16xf32>,
    return
  }
  func.func @transform_0(%arg0: i32) -> (i32, i32) {
    %c0_i32 = arith.constant 0 : i32
    %c0_i32_0 = arith.constant 0 : i32
    return %arg0, %c0_i32 : i32, i32
  }
  func.func @transform_1(%arg0: i32) -> (i32, i32) {
    %c0_i32 = arith.constant 0 : i32
    %c0_i32_0 = arith.constant 0 : i32
    return %arg0, %c0_i32 : i32, i32
  }
  func.func @transform_2(%arg0: i32) -> (i32, i32) {
    %c0_i32 = arith.constant 0 : i32
    %c0_i32_0 = arith.constant 0 : i32
    %c0_i32_1 = arith.constant 0 : i32
    return %c0_i32, %c0_i32_0 : i32, i32
  }
  func.func @transform_3(%arg0: i32) -> (i32, i32) {
    %c0_i32 = arith.constant 0 : i32
    %c0_i32_0 = arith.constant 0 : i32
    %c0_i32_1 = arith.constant 0 : i32
    return %c0_i32, %c0_i32_0 : i32, i32
  }
  func.func @transform_4(%arg0: i32) -> (i32, i32) {
    %c0_i32 = arith.constant 0 : i32
    %c0_i32_0 = arith.constant 0 : i32
    %c0_i32_1 = arith.constant 0 : i32
    return %c0_i32, %c0_i32_0 : i32, i32
  }
  func.func @transform_5(%arg0: i32) -> (i32, i32) {
    %c0_i32 = arith.constant 0 : i32
    %c0_i32_0 = arith.constant 0 : i32
    %c0_i32_1 = arith.constant 0 : i32
    return %c0_i32, %c0_i32_0 : i32, i32
  }
  func.func @transform_6(%arg0: i32) -> (i32, i32) {
    %c0_i32 = arith.constant 0 : i32
    %c0_i32_0 = arith.constant 0 : i32
    %c0_i32_1 = arith.constant 0 : i32
    return %c0_i32, %c0_i32_0 : i32, i32
  }
  func.func @transform_7(%arg0: i32) -> (i32, i32) {
    %c0_i32 = arith.constant 0 : i32
    %c0_i32_0 = arith.constant 0 : i32
    %c0_i32_1 = arith.constant 0 : i32
    return %c0_i32, %c0_i32_0 : i32, i32
  }
  func.func @transform_8(%arg0: i32) -> (i32, i32) {
    %c0_i32 = arith.constant 0 : i32
    %c0_i32_0 = arith.constant 0 : i32
    %c0_i32_1 = arith.constant 0 : i32
    return %c0_i32, %c0_i32_0 : i32, i32
  }
  func.func @transform_9(%arg0: i32) -> (i32, i32, i32) {
    %c0_i32 = arith.constant 0 : i32
    %c0_i32_0 = arith.constant 0 : i32
    %c0_i32_1 = arith.constant 0 : i32
    return %c0_i32, %arg0, %c0_i32_0 : i32, i32, i32
  }
  func.func @transform_10(%arg0: i32) -> (i32, i32) {
    %c0_i32 = arith.constant 0 : i32
    %c0_i32_0 = arith.constant 0 : i32
    return %arg0, %c0_i32 : i32, i32
  }
  func.func @transform_11(%arg0: i32) -> (i32, i32, i32) {
    %c0_i32 = arith.constant 0 : i32
    %c0_i32_0 = arith.constant 0 : i32
    %c0_i32_1 = arith.constant 0 : i32
    return %c0_i32, %arg0, %c0_i32_0 : i32, i32, i32
  }
}

</mosaic_0001>

<llo_original>
// kernel: tpu_custom_call.1
$region0: #{tpu_custom_call.1}
  #allocation0 [shape = 'u32[]', space=smem, size = 0x4, offset = 0x4, fixed_abs, tag = 'smem constant byte address 0x4 - core index']
  #allocation1 [shape = 'u32[72,128]{1,0:T(1,128)}', space=vmem, size = 0x9000, scoped, tag = 'internal scratch']
  %s0 = inlined_call_operand.hbm [shape: f32[8,32], index: 0, kind: input, shape index: {}]
  %s1 = inlined_call_operand.hbm [shape: f32[8,8], index: 1, kind: input, shape index: {}]
  %s2 = inlined_call_operand.vmem [shape: bf16[32,64], index: 2, kind: input, shape index: {}]
  %s3 = inlined_call_operand.vmem [shape: bf16[8,64], index: 3, kind: input, shape index: {}]
  %s4 = inlined_call_operand.hbm [shape: f32[1,64], index: 4, kind: input, shape index: {}]
  %s5 = inlined_call_operand.vmem [shape: bf16[64,64], index: 5, kind: input, shape index: {}]
  %s6 = inlined_call_operand.vmem [shape: f32[1,64], index: 6, kind: input, shape index: {}]
  %s7 = inlined_call_operand.vmem [shape: bf16[64,32], index: 7, kind: input, shape index: {}]
  %s8 = inlined_call_operand.vmem [shape: f32[1,32], index: 8, kind: input, shape index: {}]
  %s9 = inlined_call_operand.hbm [shape: f32[2,8,16], index: 9, kind: input, shape index: {}]
  %s10 = inlined_call_operand.hbm [shape: f32[8,32], index: 10, kind: output, shape index: {0}]
  %s11 = inlined_call_operand.hbm [shape: f32[2,8,16], index: 11, kind: output, shape index: {1}]
  %12 = xla_tuple %s10, %s11
  %s13 = sld [smem:[#allocation0]]
  $region74: #{tpu_custom_call.1} parent=0
    _
  %s15 = ssub.s32 1, %s13
  %s16 = scalar_select 0, %s15, %s13
  $region1: #{tpu_custom_call.1} parent=0
    #allocation2 [shape = 'u8[4096]{0}', space=vmem, size = 0x1000, scoped, tag = 'input window, operand 0, single buffered']
    #allocation3 [shape = 's32[1]{0}', space=sflag, size = 0x4, scoped, tag = 'scoped memory for tpu_custom_call.1']
    #allocation4 [shape = 's32[1]{0}', space=sflag, size = 0x4, scoped, tag = 'scoped memory for tpu_custom_call.1']
    #allocation5 [shape = 'u8[4096]{0}', space=vmem, size = 0x1000, scoped, tag = 'input window, operand 1, single buffered']
    #allocation6 [shape = 's32[1]{0}', space=sflag, size = 0x4, scoped, tag = 'scoped memory for tpu_custom_call.1']
    #allocation7 [shape = 'u8[512]{0}', space=vmem, size = 0x400, scoped, tag = 'input window, operand 4, single buffered']
    #allocation8 [shape = 'u8[8192]{0}', space=vmem, size = 0x2000, scoped, tag = 'input window, operand 9, single buffered']
    #allocation9 [shape = 's32[1]{0}', space=sflag, size = 0x4, scoped, tag = 'scoped memory for tpu_custom_call.1']
    #allocation10 [shape = 'u8[4096]{0}', space=vmem, size = 0x1000, scoped, tag = 'output window, operand 0, single buffered']
    #allocation11 [shape = 'u8[8192]{0}', space=vmem, size = 0x2000, scoped, tag = 'output window, operand 1, single buffered']
    #allocation12 [shape = 's32[1]{0}', space=sflag, size = 0x4, scoped, tag = 'scoped memory for tpu_custom_call.1']
    %17 = vsyncpa [#allocation3], 0
    %18 = vsyncpa [#allocation6], 0
    %19 = vsyncpa [#allocation9], 0
    %20 = vsyncpa [#allocation4], 0
    %21 = vsyncpa [#allocation12], 0
    // Predicated region
    $region2: #{tpu_custom_call.1} parent=1 // pred_check
      _
    $region3: #{tpu_custom_call.1} parent=1 // pred_check_branch
      %23 = sbr.rel (0) target = $region5
    $region4: #{tpu_custom_call.1} parent=1 // pred_region
      %25 = vsyncadd [#allocation3], 0
      %s27 = sshll.u32 %s0, 4
      %s28 = int_to_ptr.hbm [resolvable:$true] %s27
      %s29 = sshll.u32 [#allocation2], 4
      %s30 = int_to_ptr.vmem [resolvable:$true] %s29
      %32 = dma.hbm_to_vmem [thread:$0]  %s28, 128, %s30, [#allocation3]
    $region5: #{tpu_custom_call.1} parent=1 // pred_fallthru
      _
    // Predicated region
    $region6: #{tpu_custom_call.1} parent=1 // pred_check
      _
    $region7: #{tpu_custom_call.1} parent=1 // pred_check_branch
      %34 = sbr.rel (0) target = $region9
    $region8: #{tpu_custom_call.1} parent=1 // pred_region
      %36 = vsyncadd [#allocation6], 0
      %s38 = sshll.u32 %s1, 4
      %s39 = int_to_ptr.hbm [resolvable:$true] %s38
      %s40 = sshll.u32 [#allocation5], 4
      %s41 = int_to_ptr.vmem [resolvable:$true] %s40
      %43 = dma.hbm_to_vmem [thread:$0]  %s39, 128, %s41, [#allocation6]
    $region9: #{tpu_custom_call.1} parent=1 // pred_fallthru
      _
    // Predicated region
    $region10: #{tpu_custom_call.1} parent=1 // pred_check
      _
    $region11: #{tpu_custom_call.1} parent=1 // pred_check_branch
      %45 = sbr.rel (0) target = $region13
    $region12: #{tpu_custom_call.1} parent=1 // pred_region
      _
    $region13: #{tpu_custom_call.1} parent=1 // pred_fallthru
      _
    // Predicated region
    $region14: #{tpu_custom_call.1} parent=1 // pred_check
      _
    $region15: #{tpu_custom_call.1} parent=1 // pred_check_branch
      %47 = sbr.rel (0) target = $region17
    $region16: #{tpu_custom_call.1} parent=1 // pred_region
      _
    $region17: #{tpu_custom_call.1} parent=1 // pred_fallthru
      _
    // Predicated region
    $region18: #{tpu_custom_call.1} parent=1 // pred_check
      _
    $region19: #{tpu_custom_call.1} parent=1 // pred_check_branch
      %49 = sbr.rel (0) target = $region21
    $region20: #{tpu_custom_call.1} parent=1 // pred_region
      %51 = vsyncadd [#allocation6], 0
      %s53 = sshll.u32 %s4, 4
      %s54 = int_to_ptr.hbm [resolvable:$true] %s53
      %s55 = sshll.u32 [#allocation7], 4
      %s56 = int_to_ptr.vmem [resolvable:$true] %s55
      %58 = dma.hbm_to_vmem [thread:$0]  %s54, 16, %s56, [#allocation6]
    $region21: #{tpu_custom_call.1} parent=1 // pred_fallthru
      _
    // Predicated region
    $region22: #{tpu_custom_call.1} parent=1 // pred_check
      _
    $region23: #{tpu_custom_call.1} parent=1 // pred_check_branch
      %60 = sbr.rel (0) target = $region25
    $region24: #{tpu_custom_call.1} parent=1 // pred_region
      _
    $region25: #{tpu_custom_call.1} parent=1 // pred_fallthru
      _
    // Predicated region
    $region26: #{tpu_custom_call.1} parent=1 // pred_check
      _
    $region27: #{tpu_custom_call.1} parent=1 // pred_check_branch
      %62 = sbr.rel (0) target = $region29
    $region28: #{tpu_custom_call.1} parent=1 // pred_region
      _
    $region29: #{tpu_custom_call.1} parent=1 // pred_fallthru
      _
    // Predicated region
    $region30: #{tpu_custom_call.1} parent=1 // pred_check
      _
    $region31: #{tpu_custom_call.1} parent=1 // pred_check_branch
      %64 = sbr.rel (0) target = $region33
    $region32: #{tpu_custom_call.1} parent=1 // pred_region
      _
    $region33: #{tpu_custom_call.1} parent=1 // pred_fallthru
      _
    // Predicated region
    $region34: #{tpu_custom_call.1} parent=1 // pred_check
      _
    $region35: #{tpu_custom_call.1} parent=1 // pred_check_branch
      %66 = sbr.rel (0) target = $region37
    $region36: #{tpu_custom_call.1} parent=1 // pred_region
      _
    $region37: #{tpu_custom_call.1} parent=1 // pred_fallthru
      _
    // Predicated region
    $region38: #{tpu_custom_call.1} parent=1 // pred_check
      _
    $region39: #{tpu_custom_call.1} parent=1 // pred_check_branch
      %68 = sbr.rel (0) target = $region41
    $region40: #{tpu_custom_call.1} parent=1 // pred_region
      %70 = vsyncadd [#allocation9], 0
      %s71 = sshll.u32 %s9, 4
      %s72 = int_to_ptr.hbm [resolvable:$true] %s71
      %s73 = sshll.u32 [#allocation8], 4
      %s74 = int_to_ptr.vmem [resolvable:$true] %s73
      %79 = dma.hbm_to_vmem [thread:$0]  %s72, 256, %s74, [#allocation9], 128, 128, 8
    $region41: #{tpu_custom_call.1} parent=1 // pred_fallthru
      _
    // Predicated region
    $region42: #{tpu_custom_call.1} parent=1 // pred_check
      _
    $region43: #{tpu_custom_call.1} parent=1 // pred_check_branch
      %81 = sbr.rel (0) target = $region45
    $region44: #{tpu_custom_call.1} parent=1 // pred_region
      %83 = dma.done [#allocation3], 128
    $region45: #{tpu_custom_call.1} parent=1 // pred_fallthru
      _
    // Predicated region
    $region46: #{tpu_custom_call.1} parent=1 // pred_check
      _
    $region47: #{tpu_custom_call.1} parent=1 // pred_check_branch
      %85 = sbr.rel (0) target = $region49
    $region48: #{tpu_custom_call.1} parent=1 // pred_region
      %87 = dma.done [#allocation6], 128
    $region49: #{tpu_custom_call.1} parent=1 // pred_fallthru
      _
    // Predicated region
    $region50: #{tpu_custom_call.1} parent=1 // pred_check
      _
    $region51: #{tpu_custom_call.1} parent=1 // pred_check_branch
      %89 = sbr.rel (0) target = $region53
    $region52: #{tpu_custom_call.1} parent=1 // pred_region
      %91 = dma.done [#allocation6], 16
    $region53: #{tpu_custom_call.1} parent=1 // pred_fallthru
      _
    // Predicated region
    $region54: #{tpu_custom_call.1} parent=1 // pred_check
      _
    $region55: #{tpu_custom_call.1} parent=1 // pred_check_branch
      %93 = sbr.rel (0) target = $region57
    $region56: #{tpu_custom_call.1} parent=1 // pred_region
      %95 = dma.done [#allocation9], 256
    $region57: #{tpu_custom_call.1} parent=1 // pred_fallthru
      _
    %v97 = vld [vmem:[#allocation2] sm:$0xff]
    %v98 = vpack.c.bf16 %v97, %v97
    %v99 = vld [vmem:[%s2] sm:$0xf]
    %v100 = vld [vmem:[%s2 + $0x4] sm:$0xf]
    %v101 = vld [vmem:[%s2 + $0x8] sm:$0xf]
    %v102 = vld [vmem:[%s2 + $0xc] sm:$0xf]
    %v103 = vld [vmem:[#allocation5] sm:$0xff]
    %v104 = vpack.c.bf16 %v103, %v103
    %v105 = vld [vmem:[%s3] sm:$0xf]
    %vm106 = vcmask 64512
    %v108 = vsel %vm106, %v104, 0
    %vm110 = vcmask 1043456
    %v112 = vsel %vm110, %v105, 0
    %114 = vmatpush.bf16.msra.mxu0 0
    %115 = vmatpush.bf16.msra.mxu0 0
    %116 = vmatpush.bf16.msra.mxu0 0
    %117 = vmatpush.bf16.msra.mxu0 0
    %118 = vmatpush.bf16.msra.mxu0 0
    %119 = vmatpush.bf16.msra.mxu0 0
    %120 = vmatpush.bf16.msra.mxu0 0
    %121 = vmatpush.bf16.msra.mxu0 %v112
    %122 = vmatmul.bf16.gmra.mxu0 %v108
    %v123 = vpop.f32.mrf.mxu0
    %v124 = vadd.f32 0.0, %v123
    %v125 = vpop.f32.mrf.mxu0
    %126 = vdwg.mxu0
    %v131 = vunpack.c.l.b16 %v99
    %v132 = vunpack.c.l.b16 %v100
    %v133 = vunpack.c.l.b16 %v101
    %v134 = vunpack.c.l.b16 %v102
    %v135 = vpack.c.b16 %v132, %v131
    %v136 = vpack.c.b16 %v134, %v133
    %vm139 = vcmask 261120
    %v141 = vsel %vm139, %v98, 0
    %143 = vmatpush.bf16.msra.mxu0 0
    %144 = vmatpush.bf16.msra.mxu0 0
    %145 = vmatpush.bf16.msra.mxu0 0
    %146 = vmatpush.bf16.msra.mxu0 0
    %147 = vmatpush.bf16.msra.mxu0 0
    %148 = vmatpush.bf16.msra.mxu0 0
    %149 = vmatpush.bf16.msra.mxu0 %v136
    %150 = vmatpush.bf16.msra.mxu0 %v135
    %151 = vmatmul.bf16.gmra.mxu0 %v141
    %v152 = vpop.f32.mrf.mxu0
    %v153 = vadd.f32 %v124, %v152
    %v154 = vpop.f32.mrf.mxu0
    %155 = vdwg.mxu0
    %v156 = vld [vmem:[#allocation7] sm:$0x1]
    %v158 = vperm.slane %v156, 0
    %v160 = vadd.f32 %v153, %v158
    %vm161 = vcmp.gt.f32.partialorder %v160, 0.0
    %v162 = vmul.f32 %v160, 0.01
    %v163 = vsel %vm161, %v160, %v162
    %v164 = vpack.c.bf16 %v163, %v163
    %v165 = vld [vmem:[%s5] sm:$0xf]
    %v166 = vld [vmem:[%s5 + $0x4] sm:$0xf]
    %v167 = vld [vmem:[%s5 + $0x8] sm:$0xf]
    %v168 = vld [vmem:[%s5 + $0xc] sm:$0xf]
    %v169 = vld [vmem:[%s5 + $0x10] sm:$0xf]
    %v170 = vld [vmem:[%s5 + $0x14] sm:$0xf]
    %v171 = vld [vmem:[%s5 + $0x18] sm:$0xf]
    %v172 = vld [vmem:[%s5 + $0x1c] sm:$0xf]
    %v173 = vld [vmem:[%s6] sm:$0x1]
    %v175 = vperm.slane %v173, 0
    %v185 = vunpack.c.l.b16 %v165
    %v186 = vunpack.c.l.b16 %v166
    %v187 = vunpack.c.l.b16 %v167
    %v188 = vunpack.c.l.b16 %v168
    %v189 = vunpack.c.l.b16 %v169
    %v190 = vunpack.c.l.b16 %v170
    %v191 = vunpack.c.l.b16 %v171
    %v192 = vunpack.c.l.b16 %v172
    %v193 = vpack.c.b16 %v186, %v185
    %v194 = vpack.c.b16 %v188, %v187
    %v195 = vpack.c.b16 %v190, %v189
    %v196 = vpack.c.b16 %v192, %v191
    %vm201 = vcmask 523264
    %v203 = vsel %vm201, %v164, 0
    %205 = vmatpush.bf16.msra.mxu0 0
    %206 = vmatpush.bf16.msra.mxu0 0
    %207 = vmatpush.bf16.msra.mxu0 0
    %208 = vmatpush.bf16.msra.mxu0 0
    %209 = vmatpush.bf16.msra.mxu0 %v196
    %210 = vmatpush.bf16.msra.mxu0 %v195
    %211 = vmatpush.bf16.msra.mxu0 %v194
    %212 = vmatpush.bf16.msra.mxu0 %v193
    %213 = vmatmul.bf16.gmra.mxu0 %v203
    %v214 = vpop.f32.mrf.mxu0
    %v215 = vadd.f32 %v175, %v214
    %v216 = vpop.f32.mrf.mxu0
    %217 = vdwg.mxu0
    %vm218 = vcmp.gt.f32.partialorder %v215, 0.0
    %v219 = vmul.f32 %v215, 0.01
    %v220 = vsel %vm218, %v215, %v219
    %v221 = vpack.c.bf16 %v220, %v220
    %v222 = vld [vmem:[%s7] sm:$0xf]
    %v223 = vld [vmem:[%s7 + $0x4] sm:$0xf]
    %v224 = vld [vmem:[%s7 + $0x8] sm:$0xf]
    %v225 = vld [vmem:[%s7 + $0xc] sm:$0xf]
    %v226 = vld [vmem:[%s7 + $0x10] sm:$0xf]
    %v227 = vld [vmem:[%s7 + $0x14] sm:$0xf]
    %v228 = vld [vmem:[%s7 + $0x18] sm:$0xf]
    %v229 = vld [vmem:[%s7 + $0x1c] sm:$0xf]
    %v230 = vld [vmem:[%s8] sm:$0x1]
    %v232 = vperm.slane %v230, 0
    %v242 = vunpack.c.l.b16 %v222
    %v243 = vunpack.c.l.b16 %v223
    %v244 = vunpack.c.l.b16 %v224
    %v245 = vunpack.c.l.b16 %v225
    %v246 = vunpack.c.l.b16 %v226
    %v247 = vunpack.c.l.b16 %v227
    %v248 = vunpack.c.l.b16 %v228
    %v249 = vunpack.c.l.b16 %v229
    %v250 = vpack.c.b16 %v243, %v242
    %v251 = vpack.c.b16 %v245, %v244
    %v252 = vpack.c.b16 %v247, %v246
    %v253 = vpack.c.b16 %v249, %v248
    %v259 = vsel %vm201, %v221, 0
    %261 = vmatpush.bf16.msra.mxu0 0
    %262 = vmatpush.bf16.msra.mxu0 0
    %263 = vmatpush.bf16.msra.mxu0 0
    %264 = vmatpush.bf16.msra.mxu0 0
    %265 = vmatpush.bf16.msra.mxu0 %v253
    %266 = vmatpush.bf16.msra.mxu0 %v252
    %267 = vmatpush.bf16.msra.mxu0 %v251
    %268 = vmatpush.bf16.msra.mxu0 %v250
    %269 = vmatmul.bf16.gmra.mxu0 %v259
    %v270 = vpop.f32.mrf.mxu0
    %v271 = vadd.f32 %v232, %v270
    %v272 = vpop.f32.mrf.mxu0
    %273 = vdwg.mxu0
    %v274 = vmul.f32 %v271, 1.442695
    %v275 = vpow.pop %v274
    %v276 = vadd.f32 %v275, 0.0001
    %v277 = vrsqrt.pop %v276
    %v278 = vmul.f32 %v277, %v276
    %v279 = vmul.f32 %v278, %v277
    %v280 = vmul.f32 0.5, %v279
    %v281 = vsub.f32 1.5, %v280
    %v282 = vmul.f32 %v277, %v281
    %v283 = vmul.f32 %v276, %v282
    %vm284 = vcmp.eq.f32.partialorder %v276, inf
    %v285 = vsel %vm284, %v276, %v283
    %vm286 = vcmp.eq.f32.partialorder %v276, 0.0
    %v287 = vand.u32 %v276, 2147483648
    %v288 = vsel %vm286, %v287, %v285
    %vm289 = vcmask 130048
    %v290 = vsel %vm289, %v271, %v288
    %291 = vst.msk [vmem:[#allocation10] sm:$0xff] %vm139, %v290
    %v292 = vld [vmem:[#allocation8] sm:$0xff]
    %v293 = vld [vmem:[#allocation8 + $0x8] sm:$0xff]
    %296 = vrot.lane.b32.xlu0 %v292, 16
    %v297 = vpop.permute.xlu0 %296
    %298 = vrot.lane.b32.xlu0 %v293, 16
    %v299 = vpop.permute.xlu0 %298
    %v302 = vmul.f32 %v288, %v297
    %v303 = vmul.f32 %v288, %v299
    %306 = vrot.lane.b32.xlu0 %v302, 112
    %v307 = vpop.permute.xlu0 %306
    %308 = vrot.lane.b32.xlu0 %v303, 112
    %v309 = vpop.permute.xlu0 %308
    %v312 = vadd.f32 %v271, %v307
    %v313 = vadd.f32 %v271, %v309
    %314 = vst.msk [vmem:[#allocation11] sm:$0xff] %vm289, %v312
    %315 = vst.msk [vmem:[#allocation11 + $0x8] sm:$0xff] %vm289, %v313
    // Predicated region
    $region58: #{tpu_custom_call.1} parent=1 // pred_check
      _
    $region59: #{tpu_custom_call.1} parent=1 // pred_check_branch
      %317 = sbr.rel (0) target = $region61
    $region60: #{tpu_custom_call.1} parent=1 // pred_region
      %319 = vsyncadd [#allocation4], 0
      %s321 = sshll.u32 [#allocation10], 4
      %s322 = int_to_ptr.vmem [resolvable:$true] %s321
      %s323 = sshll.u32 %s10, 4
      %s324 = int_to_ptr.hbm [resolvable:$true] %s323
      %326 = dma.vmem_to_hbm [thread:$0]  %s322, 128, %s324, [#allocation4]
    $region61: #{tpu_custom_call.1} parent=1 // pred_fallthru
      _
    // Predicated region
    $region62: #{tpu_custom_call.1} parent=1 // pred_check
      _
    $region63: #{tpu_custom_call.1} parent=1 // pred_check_branch
      %328 = sbr.rel (0) target = $region65
    $region64: #{tpu_custom_call.1} parent=1 // pred_region
      %330 = vsyncadd [#allocation12], 0
      %s331 = sshll.u32 [#allocation11], 4
      %s332 = int_to_ptr.vmem [resolvable:$true] %s331
      %s333 = sshll.u32 %s11, 4
      %s334 = int_to_ptr.hbm [resolvable:$true] %s333
      %339 = dma.vmem_to_hbm [thread:$0]  %s332, 256, %s334, [#allocation12], 128, 128, 8
    $region65: #{tpu_custom_call.1} parent=1 // pred_fallthru
      _
    // Predicated region
    $region66: #{tpu_custom_call.1} parent=1 // pred_check
      _
    $region67: #{tpu_custom_call.1} parent=1 // pred_check_branch
      %341 = sbr.rel (0) target = $region69
    $region68: #{tpu_custom_call.1} parent=1 // pred_region
      %343 = dma.done [#allocation4], 128
    $region69: #{tpu_custom_call.1} parent=1 // pred_fallthru
      _
    // Predicated region
    $region70: #{tpu_custom_call.1} parent=1 // pred_check
      _
    $region71: #{tpu_custom_call.1} parent=1 // pred_check_branch
      %345 = sbr.rel (0) target = $region73
    $region72: #{tpu_custom_call.1} parent=1 // pred_region
      %347 = dma.done [#allocation12], 256
    $region73: #{tpu_custom_call.1} parent=1 // pred_fallthru
      _
    %348 = vsyncpa [#allocation3], 1
    %349 = vsyncpa [#allocation6], 1
    %350 = vsyncpa [#allocation9], 1
    %351 = vsyncpa [#allocation4], 1
    %352 = vsyncpa [#allocation12], 1

</llo_original>
